<compile_context>
chip_gen: v7x
topology: tpu7x:2x2x1
jax: 0.10.0
libtpu: 0.0.40
codegen_flags: <defaults>
</compile_context>

<pallas_src>
import math

import jax
import jax.numpy as jnp
from jax.experimental import pallas as pl
from jax.experimental.pallas import tpu as pltpu

_LANES = 128
_SUBLANES = 8

# ~4 MiB per block. Pallas double-buffers input + output => ~16 MiB VMEM,
# comfortably inside the 32 MiB scoped limit requested below and v7x's
# 64 MiB physical VMEM, while being far past the DMA-overhead knee.
_TARGET_BLOCK_BYTES = 4 * 1024 * 1024
_VMEM_LIMIT_BYTES = 32 * 1024 * 1024

# Lane-dense slab widths to try (widest first): wider last dim => bigger
# contiguous DMAs and wide unmasked vector stores.
_WIDTH_CANDIDATES = (4096, 2048, 1024, 512, 256, 128)


def _copy_kernel(x_ref, o_ref):
    o_ref[...] = x_ref[...]


def _choose_width(n_elems):
    """Widest candidate lane width that exactly divides the element count."""
    for w in _WIDTH_CANDIDATES:
        if n_elems % w == 0:
            return w
    return None


def _choose_tile_rows(rows, row_bytes):
    """Sublane-aligned tile height close to the target block size."""
    target = max(_SUBLANES, _TARGET_BLOCK_BYTES // max(1, row_bytes))
    tile = min(rows, target)
    # Prefer >= 2 grid steps on non-tiny inputs so both v7x TensorCores get
    # balanced work ("parallel" grid axis); on v5e/v6e this is neutral.
    if tile == rows and rows >= 2 * _SUBLANES:
        tile = pl.cdiv(rows, 2)
    if tile < rows:
        # Sublane alignment when the block does not span the whole array.
        tile = max(_SUBLANES, (tile // _SUBLANES) * _SUBLANES)
    return tile


def _identity_copy_2d(x2d):
    """Identity copy of a lane-dense (rows, W) slab through a Pallas kernel."""
    rows, width = x2d.shape
    row_bytes = width * x2d.dtype.itemsize
    tile_rows = _choose_tile_rows(rows, row_bytes)
    grid = (pl.cdiv(rows, tile_rows),)  # cdiv: every output row is covered
    return pl.pallas_call(
        _copy_kernel,
        out_shape=jax.ShapeDtypeStruct((rows, width), x2d.dtype),
        grid_spec=pltpu.PrefetchScalarGridSpec(
            num_scalar_prefetch=0,
            grid=grid,
            in_specs=[pl.BlockSpec((tile_rows, width), lambda i: (i, 0))],
            out_specs=pl.BlockSpec((tile_rows, width), lambda i: (i, 0)),
        ),
        compiler_params=pltpu.CompilerParams(
            dimension_semantics=("parallel",),
            vmem_limit_bytes=_VMEM_LIMIT_BYTES,
        ),
    )(x2d)


class Reshape:
    """JAX/Pallas equivalent of the PyTorch Reshape(nn.Module)."""

    def __init__(self, *args):
        self.shape = args

    def _resolve_shape(self, n_elems):
        # Support a single -1, like torch .view does.
        shape = list(self.shape)
        if shape.count(-1) > 1:
            raise ValueError("only one dimension can be -1")
        if -1 in shape:
            known = math.prod(d for d in shape if d != -1)
            shape[shape.index(-1)] = n_elems // known
        if math.prod(shape) != n_elems:
            raise ValueError(
                f"shape {tuple(shape)} is invalid for input of size {n_elems}"
            )
        return tuple(shape)

    def __call__(self, x):
        n_elems = math.prod(x.shape)
        out_shape = self._resolve_shape(n_elems)

        width = _choose_width(n_elems)
        if width is not None:
            # Fast path: no pad, no post-slice.  The surrounding reshapes are
            # metadata-only for a contiguous row-major array, so the only HBM
            # traffic is the kernel's single read + single write.
            x2d = jnp.reshape(x, (n_elems // width, width))
            y2d = _identity_copy_2d(x2d)
            return jnp.reshape(y2d, out_shape)

        # Ragged fallback (element count not a multiple of 128): pad only up
        # to the next full (8,128) tile and slice the tail off afterwards.
        flat = jnp.reshape(x, (-1,))
        slab = _SUBLANES * _LANES
        padded_len = pl.cdiv(n_elems, slab) * slab
        flat = jnp.pad(flat, (0, padded_len - n_elems))
        y2d = _identity_copy_2d(
            jnp.reshape(flat, (padded_len // _LANES, _LANES)))
        return jnp.reshape(jnp.reshape(y2d, (-1,))[:n_elems], out_shape)


if __name__ == "__main__":
    key = jax.random.PRNGKey(0)
    # Small NCHW-style input: batch=2, channels=4, spatial=16x16.
    x = jax.random.normal(key, (2, 4, 16, 16), dtype=jnp.float32)

    # Typical usage: flatten channel/spatial dims per batch element.
    y = jax.block_until_ready(Reshape(2, 4 * 16 * 16)(x))
    expected = jnp.reshape(x, (2, 4 * 16 * 16))
    assert y.shape == (2, 1024)
    assert y.dtype == x.dtype
    assert bool(jnp.all(y == expected))

    # Exercise the -1 convention, like x.view(-1, 256).
    y2 = jax.block_until_ready(Reshape(-1, 256)(x))
    assert y2.shape == (8, 256)
    assert bool(jnp.all(y2 == jnp.reshape(x, (8, 256))))

    # Exercise the ragged fallback (element count not a multiple of 128).
    x_odd = jax.random.normal(jax.random.PRNGKey(1), (3, 5, 7), jnp.float32)
    y3 = jax.block_until_ready(Reshape(-1)(x_odd))
    assert y3.shape == (105,)
    assert bool(jnp.all(y3 == jnp.reshape(x_odd, (105,))))

    print("KERNEL_OK")
</pallas_src>

<mosaic_0001>
module attributes {stable_mosaic.version = 11 : i64} {
  func.func @_copy_kernel(%arg0: i32, %arg1: memref<1x2048xf32, #tpu.memory_space<vmem>>, %arg2: memref<1x2048xf32, #tpu.memory_space<vmem>>) attributes {dimension_semantics = [#tpu.dimension_semantics<parallel>], iteration_bounds = array<i64: 1>, scalar_prefetch = 0 : i64, scratch_operands = 0 : i64, tpu.core_type = #tpu.core_type<tc>, window_params = [{transform_indices = @transform_0, window_bounds = array<i64: 1, 2048>}, {transform_indices = @transform_1, window_bounds = array<i64: 1, 2048>}]} {
    %c0 = arith.constant 0 : index
    %c0_0 = arith.constant 0 : index
    %0 = vector.load %arg1[%c0, %c0_0] : memref<1x2048xf32, #tpu.memory_space<vmem>>, vector<1x2048xf32>
    %c0_1 = arith.constant 0 : index
    %c0_2 = arith.constant 0 : index
    %1 = vector.load %arg2[%c0_1, %c0_2] : memref<1x2048xf32, #tpu.memory_space<vmem>>, vector<1x2048xf32>
    tpu.vector_store %arg2[%c0_1, %c0_2], %0 {strides = array<i32>} : memref<1x2048xf32, #tpu.memory_space<vmem>>, vector<1x2048xf32>,
    return
  }
  func.func @transform_0(%arg0: i32) -> (i32, i32) {
    %c0_i32 = arith.constant 0 : i32
    %c0_i32_0 = arith.constant 0 : i32
    return %arg0, %c0_i32 : i32, i32
  }
  func.func @transform_1(%arg0: i32) -> (i32, i32) {
    %c0_i32 = arith.constant 0 : i32
    %c0_i32_0 = arith.constant 0 : i32
    return %arg0, %c0_i32 : i32, i32
  }
}

</mosaic_0001>

<llo_original>
// kernel: tpu_custom_call.1
$region0: #{tpu_custom_call.1}
  #allocation0 [shape = 'u32[]', space=smem, size = 0x4, offset = 0x4, fixed_abs, tag = 'smem constant byte address 0x4 - core index']
  #allocation1 [shape = 'u32[144,128]{1,0:T(1,128)}', space=vmem, size = 0x12000, scoped, tag = 'internal scratch']
  %s0 = inlined_call_operand.hbm [shape: f32[1,2048], index: 0, kind: input, shape index: {}]
  %s1 = inlined_call_operand.hbm [shape: f32[1,2048], index: 1, kind: output, shape index: {}]
  %s2 = sld [smem:[#allocation0]]
  $region18: #{tpu_custom_call.1} parent=0
    _
  %s4 = ssub.s32 1, %s2
  %s5 = scalar_select 0, %s4, %s2
  $region1: #{tpu_custom_call.1} parent=0
    #allocation2 [shape = 'u8[8192]{0}', space=vmem, size = 0x2000, scoped, tag = 'input window, operand 0, single buffered']
    #allocation3 [shape = 's32[1]{0}', space=sflag, size = 0x4, scoped, tag = 'scoped memory for tpu_custom_call.1']
    #allocation4 [shape = 's32[1]{0}', space=sflag, size = 0x4, scoped, tag = 'scoped memory for tpu_custom_call.1']
    #allocation5 [shape = 'u8[8192]{0}', space=vmem, size = 0x2000, scoped, tag = 'output window, operand 0, single buffered']
    %6 = vsyncpa [#allocation3], 0
    %7 = vsyncpa [#allocation4], 0
    // Predicated region
    $region2: #{tpu_custom_call.1} parent=1 // pred_check
      _
    $region3: #{tpu_custom_call.1} parent=1 // pred_check_branch
      %9 = sbr.rel (0) target = $region5
    $region4: #{tpu_custom_call.1} parent=1 // pred_region
      %s11 = ssub.s32 256, 256
      %12 = vsyncadd [#allocation3], %s11
      %s14 = sshll.u32 [#allocation2], 4
      %s15 = int_to_ptr.vmem [resolvable:$true] %s14
      %17 = dma.hbm_to_vmem [thread:$0]  %s0, 256, %s15, [#allocation3]
    $region5: #{tpu_custom_call.1} parent=1 // pred_fallthru
      _
    // Predicated region
    $region6: #{tpu_custom_call.1} parent=1 // pred_check
      _
    $region7: #{tpu_custom_call.1} parent=1 // pred_check_branch
      %19 = sbr.rel (0) target = $region9
    $region8: #{tpu_custom_call.1} parent=1 // pred_region
      %20 = dma.done [#allocation3], 256
    $region9: #{tpu_custom_call.1} parent=1 // pred_fallthru
      _
    %v21 = vld [vmem:[#allocation2] sm:$0xff]
    %v22 = vld [vmem:[#allocation2 + $0x8] sm:$0xff]
    %23 = vst [vmem:[#allocation5] sm:$0xff] %v21
    %24 = vst [vmem:[#allocation5 + $0x8] sm:$0xff] %v22
    // Predicated region
    $region10: #{tpu_custom_call.1} parent=1 // pred_check
      _
    $region11: #{tpu_custom_call.1} parent=1 // pred_check_branch
      %26 = sbr.rel (0) target = $region13
    $region12: #{tpu_custom_call.1} parent=1 // pred_region
      %s28 = ssub.s32 256, 256
      %29 = vsyncadd [#allocation4], %s28
      %s31 = sshll.u32 [#allocation5], 4
      %s32 = int_to_ptr.vmem [resolvable:$true] %s31
      %34 = dma.vmem_to_hbm [thread:$0]  %s32, 256, %s1, [#allocation4]
    $region13: #{tpu_custom_call.1} parent=1 // pred_fallthru
      _
    // Predicated region
    $region14: #{tpu_custom_call.1} parent=1 // pred_check
      _
    $region15: #{tpu_custom_call.1} parent=1 // pred_check_branch
      %36 = sbr.rel (0) target = $region17
    $region16: #{tpu_custom_call.1} parent=1 // pred_region
      %37 = dma.done [#allocation4], 256
    $region17: #{tpu_custom_call.1} parent=1 // pred_fallthru
      _
    %38 = vsyncpa [#allocation3], 1
    %39 = vsyncpa [#allocation4], 1

</llo_original>
